<compile_context>
chip_gen: v6e
topology: v6e:2x2x1
jax: 0.10.0
libtpu: 0.0.40
codegen_flags: <defaults>
</compile_context>

<pallas_src>
import functools

import jax
import jax.numpy as jnp
from jax.experimental import pallas as pl
from jax.experimental.pallas import tpu as pltpu


def _mha_heads(qkv, heads, dim_head):
    """Per-head softmax attention on a fused (N, 3*inner) f32 QKV block.

    Q columns are pre-scaled by dim_head**-0.5 (folded into W_qkv).
    Returns the concatenated heads, shape (N, inner), f32.
    """
    inner = heads * dim_head
    outs = []
    for h in range(heads):           # static unroll; H is small
        lo = h * dim_head
        q = qkv[:, lo:lo + dim_head].astype(jnp.bfloat16)                      # (N, dh)
        k = qkv[:, inner + lo:inner + lo + dim_head].astype(jnp.bfloat16)      # (N, dh)
        v = qkv[:, 2 * inner + lo:2 * inner + lo + dim_head].astype(jnp.bfloat16)
        # q @ k^T, contracting dh, f32 accumulation on the MXU.
        dots = jax.lax.dot_general(q, k, (((1,), (1,)), ((), ())),
                                   preferred_element_type=jnp.float32)         # (N, N)
        # Numerically stable softmax numerator (f32 VPU/EUP -- safe on v5e too).
        dots = dots - jnp.max(dots, axis=-1, keepdims=True)
        p = jnp.exp(dots)
        rowsum = jnp.sum(p, axis=-1, keepdims=True)                            # (N, 1)
        pv = jnp.dot(p.astype(jnp.bfloat16), v,
                     preferred_element_type=jnp.float32)                       # (N, dh)
        # Deferred normalization: divide the (N, dh) result, not the (N, N) matrix.
        outs.append(pv * pl.reciprocal(rowsum, approx=True))
    return jnp.concatenate(outs, axis=-1) if heads > 1 else outs[0]            # (N, inner)


def _attn_proj_kernel(x_ref, wqkv_ref, wo_ref, bo_ref, o_ref, *, heads, dim_head):
    # x_ref   : (1, N, D)       one batch row
    # wqkv_ref: (D, 3*inner)    bf16, Q columns pre-scaled (grid-constant)
    # wo_ref  : (inner, Dout)   bf16 output projection (grid-constant)
    # bo_ref  : (1, Dout)       f32 bias (grid-constant)
    # o_ref   : (1, N, Dout)
    x = x_ref[0].astype(jnp.bfloat16)                                          # (N, D)
    qkv = jnp.dot(x, wqkv_ref[...], preferred_element_type=jnp.float32)        # (N, 3*inner)
    out = _mha_heads(qkv, heads, dim_head)                                     # (N, inner) f32
    proj = jnp.dot(out.astype(jnp.bfloat16), wo_ref[...],
                   preferred_element_type=jnp.float32)                         # (N, Dout)
    o_ref[0] = (proj + bo_ref[...]).astype(o_ref.dtype)


def _attn_noproj_kernel(x_ref, wqkv_ref, o_ref, *, heads, dim_head):
    # project_out == False path (heads == 1 and dim_head == dim): skip Wo entirely.
    # TODO(synk): if dim_head < 128 this output block is sub-128 lanes (masked stores).
    x = x_ref[0].astype(jnp.bfloat16)
    qkv = jnp.dot(x, wqkv_ref[...], preferred_element_type=jnp.float32)
    o_ref[0] = _mha_heads(qkv, heads, dim_head).astype(o_ref.dtype)


@functools.partial(jax.jit, static_argnames=("heads", "dim_head"))
def attention_pallas(x, wqkv, wo, bo, *, heads, dim_head):
    """Fused MHA: softmax((x Wq)(x Wk)^T * dh^-0.5)(x Wv) [@ Wo + bo].

    x    : (B, N, D)
    wqkv : (D, 3*inner) bf16, columns [q | k | v], q pre-scaled by dh**-0.5
    wo   : (inner, Dout) bf16 or None (project_out=False)
    bo   : (1, Dout) f32 or None
    """
    B, N, D = x.shape
    inner = heads * dim_head
    project_out = wo is not None
    Dout = wo.shape[-1] if project_out else inner

    # VMEM budget: double-buffered x/out blocks + weights + in-kernel intermediates,
    # with 2x headroom, clamped to v7x's 64 MiB physical VMEM.
    est = (2 * N * D * x.dtype.itemsize
           + 2 * N * Dout * x.dtype.itemsize
           + 2 * (D * 3 * inner + (inner * Dout if project_out else 0)) * 2
           + 4 * (N * 3 * inner + 2 * N * N + 2 * N * inner + N * Dout))
    vmem_limit = int(min(64 << 20, max(16 << 20, 2 * est)))

    x_spec = pl.BlockSpec((1, N, D), lambda b: (b, 0, 0))
    wqkv_spec = pl.BlockSpec((D, 3 * inner), lambda b: (0, 0))
    out_spec = pl.BlockSpec((1, N, Dout), lambda b: (b, 0, 0))
    compiler_params = pltpu.CompilerParams(
        dimension_semantics=("parallel",),     # batch rows shard across TensorCores
        vmem_limit_bytes=vmem_limit,
    )

    if project_out:
        kernel = functools.partial(_attn_proj_kernel, heads=heads, dim_head=dim_head)
        in_specs = [x_spec, wqkv_spec,
                    pl.BlockSpec((inner, Dout), lambda b: (0, 0)),
                    pl.BlockSpec((1, Dout), lambda b: (0, 0))]
        args = (x, wqkv, wo, bo)
    else:
        kernel = functools.partial(_attn_noproj_kernel, heads=heads, dim_head=dim_head)
        in_specs = [x_spec, wqkv_spec]
        args = (x, wqkv)

    return pl.pallas_call(
        kernel,
        out_shape=jax.ShapeDtypeStruct((B, N, Dout), x.dtype),
        grid_spec=pltpu.PrefetchScalarGridSpec(
            num_scalar_prefetch=0,
            grid=(B,),
            in_specs=in_specs,
            out_specs=out_spec,
        ),
        compiler_params=compiler_params,
    )(*args)


class BayesAttentionPallas:
    """JAX/Pallas port of the PyTorch `Attention` module (bayesianViT.py).

    BayesLinear weights are sampled once at construction
    (w = mu + exp(log_sigma) * eps, matching torchbnn's BayesLinear forward with a
    fixed eps draw), so the forward pass itself is deterministic.  All MXU operands
    (weights) are pre-cast to bf16 and the softmax scale is folded into Wq here —
    one-time parameter prep, not per-call work.
    """

    def __init__(self, dim, heads=8, dim_head=64, dropout=0.0, *,
                 prior_mu=0.0, prior_sigma=0.1, key):
        assert dropout == 0.0  # TODO(synk): dropout > 0 (train mode) not implemented.
        inner = heads * dim_head
        project_out = not (heads == 1 and dim_head == dim)
        self.heads, self.dim_head = heads, dim_head
        scale = dim_head ** -0.5

        ks = jax.random.split(key, 6)

        def sample_bayes(k_mu, k_eps, shape):
            # torchbnn BayesLinear: w = weight_mu + exp(weight_log_sigma) * eps
            mu = prior_mu + 0.1 * jax.random.normal(k_mu, shape, jnp.float32)
            log_sigma = jnp.full(shape, jnp.log(prior_sigma), jnp.float32)
            eps = jax.random.normal(k_eps, shape, jnp.float32)
            return mu + jnp.exp(log_sigma) * eps

        # to_qkv: torch weight layout (out_features, in_features); y = x @ W^T.
        w_qkv = sample_bayes(ks[0], ks[1], (3 * inner, dim))
        self._w_qkv = w_qkv                                 # f32 copy for reference check
        wqkv = w_qkv.T                                      # (dim, 3*inner) = [q | k | v]
        wqkv = wqkv.at[:, :inner].multiply(scale)           # fold dh**-0.5 into Q columns
        self.wqkv = wqkv.astype(jnp.bfloat16)

        if project_out:
            w_out = sample_bayes(ks[2], ks[3], (dim, inner))
            b_out = sample_bayes(ks[4], ks[5], (dim,))
            self._w_out, self._b_out = w_out, b_out
            self.wo = w_out.T.astype(jnp.bfloat16)          # (inner, dim)
            self.bo = b_out.reshape(1, dim).astype(jnp.float32)
        else:
            self._w_out = self._b_out = None
            self.wo = self.bo = None                        # nn.Identity(): no matmul at all

    def __call__(self, x):
        return attention_pallas(x, self.wqkv, self.wo, self.bo,
                                heads=self.heads, dim_head=self.dim_head)


if __name__ == "__main__":
    # Small but lane-dense shapes (dim and inner_dim are multiples of 128).
    B, N, DIM = 2, 16, 128
    HEADS, DIM_HEAD = 2, 64          # inner_dim = 128, project_out = True

    key = jax.random.PRNGKey(0)
    kx, kp = jax.random.split(key)
    x = jax.random.normal(kx, (B, N, DIM), jnp.float32)

    attn = BayesAttentionPallas(DIM, heads=HEADS, dim_head=DIM_HEAD,
                                dropout=0.0, key=kp)
    out = jax.block_until_ready(attn(x))
    assert out.shape == (B, N, DIM)

    # ---- pure-JAX f32 reference, same sampled weights, structured like the torch code ----
    HI = jax.lax.Precision.HIGHEST
    inner = HEADS * DIM_HEAD
    qkv = jnp.einsum("bnd,fd->bnf", x, attn._w_qkv, precision=HI)   # x @ W_qkv^T
    q, k, v = jnp.split(qkv, 3, axis=-1)
    split_heads = lambda t: t.reshape(B, N, HEADS, DIM_HEAD).transpose(0, 2, 1, 3)
    q, k, v = map(split_heads, (q, k, v))
    dots = jnp.einsum("bhnd,bhmd->bhnm", q, k, precision=HI) * (DIM_HEAD ** -0.5)
    probs = jax.nn.softmax(dots, axis=-1)
    o = jnp.einsum("bhnm,bhmd->bhnd", probs, v, precision=HI)
    o = o.transpose(0, 2, 1, 3).reshape(B, N, inner)
    ref = jnp.einsum("bnf,of->bno", o, attn._w_out, precision=HI) + attn._b_out

    # bf16 MXU operands + approx reciprocal -> loosen tolerance vs the f32 reference.
    err = float(jnp.max(jnp.abs(out - ref)))
    tol = 3e-2 * float(jnp.max(jnp.abs(ref))) + 1e-3
    assert err < tol, f"max abs err {err} (tol {tol})"
    print("KERNEL_OK")
</pallas_src>

<mosaic_0001>
module attributes {stable_mosaic.version = 11 : i64} {
  func.func @_attn_proj_kernel(%arg0: i32, %arg1: memref<1x16x128xf32, #tpu.memory_space<vmem>>, %arg2: memref<128x384xbf16, #tpu.memory_space<vmem>>, %arg3: memref<128x128xbf16, #tpu.memory_space<vmem>>, %arg4: memref<1x128xf32, #tpu.memory_space<vmem>>, %arg5: memref<1x16x128xf32, #tpu.memory_space<vmem>>) attributes {dimension_semantics = [#tpu.dimension_semantics<parallel>], iteration_bounds = array<i64: 2>, scalar_prefetch = 0 : i64, scratch_operands = 0 : i64, tpu.core_type = #tpu.core_type<tc>, window_params = [{transform_indices = @transform_0, window_bounds = array<i64: 1, 16, 128>}, {pipeline_mode = #tpu.pipeline_mode<synchronous>, transform_indices = @transform_1, window_bounds = array<i64: 128, 384>}, {pipeline_mode = #tpu.pipeline_mode<synchronous>, transform_indices = @transform_2, window_bounds = array<i64: 128, 128>}, {pipeline_mode = #tpu.pipeline_mode<synchronous>, transform_indices = @transform_3, window_bounds = array<i64: 1, 128>}, {transform_indices = @transform_4, window_bounds = array<i64: 1, 16, 128>}]} {
    %c0 = arith.constant 0 : index
    %c0_0 = arith.constant 0 : index
    %c0_1 = arith.constant 0 : index
    %0 = vector.load %arg1[%c0, %c0_0, %c0_1] : memref<1x16x128xf32, #tpu.memory_space<vmem>>, vector<1x16x128xf32>
    %1 = vector.shape_cast %0 : vector<1x16x128xf32> to vector<16x128xf32>
    %2 = arith.truncf %1 : vector<16x128xf32> to vector<16x128xbf16>
    %c0_2 = arith.constant 0 : index
    %c0_3 = arith.constant 0 : index
    %3 = vector.load %arg2[%c0_2, %c0_3] : memref<128x384xbf16, #tpu.memory_space<vmem>>, vector<128x384xbf16>
    %cst = arith.constant dense<0.000000e+00> : vector<16x384xf32>
    %4 = tpu.matmul %2, %3, %cst {dimension_numbers = #tpu.dot_dimension_numbers<[1], [0], [0], [1], [0, 0, 1, 1], [], []>} : vector<16x128xbf16>, vector<128x384xbf16>, vector<16x384xf32> -> vector<16x384xf32>
    %5 = vector.extract_strided_slice %4 {offsets = [0, 0], sizes = [16, 64], strides = [1, 1]} : vector<16x384xf32> to vector<16x64xf32>
    %6 = arith.truncf %5 : vector<16x64xf32> to vector<16x64xbf16>
    %7 = vector.extract_strided_slice %4 {offsets = [0, 128], sizes = [16, 64], strides = [1, 1]} : vector<16x384xf32> to vector<16x64xf32>
    %8 = arith.truncf %7 : vector<16x64xf32> to vector<16x64xbf16>
    %9 = vector.extract_strided_slice %4 {offsets = [0, 256], sizes = [16, 64], strides = [1, 1]} : vector<16x384xf32> to vector<16x64xf32>
    %10 = arith.truncf %9 : vector<16x64xf32> to vector<16x64xbf16>
    %cst_4 = arith.constant dense<0.000000e+00> : vector<16x16xf32>
    %11 = tpu.matmul %6, %8, %cst_4 {dimension_numbers = #tpu.dot_dimension_numbers<[1], [1], [0], [0], [0, 0, 1, 0], [], []>} : vector<16x64xbf16>, vector<16x64xbf16>, vector<16x16xf32> -> vector<16x16xf32>
    %cst_5 = arith.constant dense<0xFF800000> : vector<16xf32>
    %12 = vector.multi_reduction <maximumf>, %11, %cst_5 [1] : vector<16x16xf32> to vector<16xf32>
    %13 = vector.shape_cast %12 : vector<16xf32> to vector<16x1xf32>
    %14 = vector.broadcast %13 : vector<16x1xf32> to vector<16x16xf32>
    %15 = arith.subf %11, %14 : vector<16x16xf32>
    %16 = math.exp %15 : vector<16x16xf32>
    %cst_6 = arith.constant dense<0.000000e+00> : vector<16xf32>
    %17 = vector.multi_reduction <add>, %16, %cst_6 [1] : vector<16x16xf32> to vector<16xf32>
    %18 = vector.shape_cast %17 : vector<16xf32> to vector<16x1xf32>
    %19 = arith.truncf %16 : vector<16x16xf32> to vector<16x16xbf16>
    %cst_7 = arith.constant dense<0.000000e+00> : vector<16x64xf32>
    %20 = tpu.matmul %19, %10, %cst_7 {dimension_numbers = #tpu.dot_dimension_numbers<[1], [0], [0], [1], [0, 0, 1, 1], [], []>} : vector<16x16xbf16>, vector<16x64xbf16>, vector<16x64xf32> -> vector<16x64xf32>
    %21 = tpu.reciprocal %18 {approx = true} : vector<16x1xf32> -> vector<16x1xf32>
    %22 = vector.broadcast %21 : vector<16x1xf32> to vector<16x64xf32>
    %23 = arith.mulf %20, %22 : vector<16x64xf32>
    %24 = vector.extract_strided_slice %4 {offsets = [0, 64], sizes = [16, 64], strides = [1, 1]} : vector<16x384xf32> to vector<16x64xf32>
    %25 = arith.truncf %24 : vector<16x64xf32> to vector<16x64xbf16>
    %26 = vector.extract_strided_slice %4 {offsets = [0, 192], sizes = [16, 64], strides = [1, 1]} : vector<16x384xf32> to vector<16x64xf32>
    %27 = arith.truncf %26 : vector<16x64xf32> to vector<16x64xbf16>
    %28 = vector.extract_strided_slice %4 {offsets = [0, 320], sizes = [16, 64], strides = [1, 1]} : vector<16x384xf32> to vector<16x64xf32>
    %29 = arith.truncf %28 : vector<16x64xf32> to vector<16x64xbf16>
    %cst_8 = arith.constant dense<0.000000e+00> : vector<16x16xf32>
    %30 = tpu.matmul %25, %27, %cst_8 {dimension_numbers = #tpu.dot_dimension_numbers<[1], [1], [0], [0], [0, 0, 1, 0], [], []>} : vector<16x64xbf16>, vector<16x64xbf16>, vector<16x16xf32> -> vector<16x16xf32>
    %cst_9 = arith.constant dense<0xFF800000> : vector<16xf32>
    %31 = vector.multi_reduction <maximumf>, %30, %cst_9 [1] : vector<16x16xf32> to vector<16xf32>
    %32 = vector.shape_cast %31 : vector<16xf32> to vector<16x1xf32>
    %33 = vector.broadcast %32 : vector<16x1xf32> to vector<16x16xf32>
    %34 = arith.subf %30, %33 : vector<16x16xf32>
    %35 = math.exp %34 : vector<16x16xf32>
    %cst_10 = arith.constant dense<0.000000e+00> : vector<16xf32>
    %36 = vector.multi_reduction <add>, %35, %cst_10 [1] : vector<16x16xf32> to vector<16xf32>
    %37 = vector.shape_cast %36 : vector<16xf32> to vector<16x1xf32>
    %38 = arith.truncf %35 : vector<16x16xf32> to vector<16x16xbf16>
    %cst_11 = arith.constant dense<0.000000e+00> : vector<16x64xf32>
    %39 = tpu.matmul %38, %29, %cst_11 {dimension_numbers = #tpu.dot_dimension_numbers<[1], [0], [0], [1], [0, 0, 1, 1], [], []>} : vector<16x16xbf16>, vector<16x64xbf16>, vector<16x64xf32> -> vector<16x64xf32>
    %40 = tpu.reciprocal %37 {approx = true} : vector<16x1xf32> -> vector<16x1xf32>
    %41 = vector.broadcast %40 : vector<16x1xf32> to vector<16x64xf32>
    %42 = arith.mulf %39, %41 : vector<16x64xf32>
    %43 = tpu.concatenate %23, %42 in 1 : vector<16x64xf32>, vector<16x64xf32> -> vector<16x128xf32>
    %44 = arith.truncf %43 : vector<16x128xf32> to vector<16x128xbf16>
    %c0_12 = arith.constant 0 : index
    %c0_13 = arith.constant 0 : index
    %45 = vector.load %arg3[%c0_12, %c0_13] : memref<128x128xbf16, #tpu.memory_space<vmem>>, vector<128x128xbf16>
    %cst_14 = arith.constant dense<0.000000e+00> : vector<16x128xf32>
    %46 = tpu.matmul %44, %45, %cst_14 {dimension_numbers = #tpu.dot_dimension_numbers<[1], [0], [0], [1], [0, 0, 1, 1], [], []>} : vector<16x128xbf16>, vector<128x128xbf16>, vector<16x128xf32> -> vector<16x128xf32>
    %c0_15 = arith.constant 0 : index
    %c0_16 = arith.constant 0 : index
    %47 = vector.load %arg4[%c0_15, %c0_16] : memref<1x128xf32, #tpu.memory_space<vmem>>, vector<1x128xf32>
    %48 = vector.broadcast %47 : vector<1x128xf32> to vector<16x128xf32>
    %49 = arith.addf %46, %48 : vector<16x128xf32>
    %c0_17 = arith.constant 0 : index
    %c0_18 = arith.constant 0 : index
    %c0_19 = arith.constant 0 : index
    %50 = vector.load %arg5[%c0_17, %c0_18, %c0_19] : memref<1x16x128xf32, #tpu.memory_space<vmem>>, vector<1x16x128xf32>
    %51 = vector.shape_cast %50 : vector<1x16x128xf32> to vector<16x128xf32>
    %52 = vector.shape_cast %49 : vector<16x128xf32> to vector<1x16x128xf32>
    tpu.vector_store %arg5[%c0_17, %c0_18, %c0_19], %52 {strides = array<i32>} : memref<1x16x128xf32, #tpu.memory_space<vmem>>, vector<1x16x128xf32>,
    return
  }
  func.func @transform_0(%arg0: i32) -> (i32, i32, i32) {
    %c0_i32 = arith.constant 0 : i32
    %c0_i32_0 = arith.constant 0 : i32
    %c0_i32_1 = arith.constant 0 : i32
    return %arg0, %c0_i32, %c0_i32_0 : i32, i32, i32
  }
  func.func @transform_1(%arg0: i32) -> (i32, i32) {
    %c0_i32 = arith.constant 0 : i32
    %c0_i32_0 = arith.constant 0 : i32
    %c0_i32_1 = arith.constant 0 : i32
    return %c0_i32, %c0_i32_0 : i32, i32
  }
  func.func @transform_2(%arg0: i32) -> (i32, i32) {
    %c0_i32 = arith.constant 0 : i32
    %c0_i32_0 = arith.constant 0 : i32
    %c0_i32_1 = arith.constant 0 : i32
    return %c0_i32, %c0_i32_0 : i32, i32
  }
  func.func @transform_3(%arg0: i32) -> (i32, i32) {
    %c0_i32 = arith.constant 0 : i32
    %c0_i32_0 = arith.constant 0 : i32
    %c0_i32_1 = arith.constant 0 : i32
    return %c0_i32, %c0_i32_0 : i32, i32
  }
  func.func @transform_4(%arg0: i32) -> (i32, i32, i32) {
    %c0_i32 = arith.constant 0 : i32
    %c0_i32_0 = arith.constant 0 : i32
    %c0_i32_1 = arith.constant 0 : i32
    return %arg0, %c0_i32, %c0_i32_0 : i32, i32, i32
  }
}

</mosaic_0001>

<llo_original>
// kernel: attention_pallas.1
$region0: #{attention_pallas.1}
  #allocation0 [shape = 'u32[]', space=smem, size = 0x4, offset = 0x4, fixed_abs, tag = 'smem constant byte address 0x4 - core index']
  #allocation1 [shape = 'u32[144,128]{1,0:T(1,128)}', space=vmem, size = 0x12000, scoped, tag = 'internal scratch']
  %s0 = inlined_call_operand.hbm [shape: f32[2,16,128], index: 0, kind: input, shape index: {}]
  %s1 = inlined_call_operand.hbm [shape: bf16[128,384], index: 1, kind: input, shape index: {}]
  %s2 = inlined_call_operand.hbm [shape: bf16[128,128], index: 2, kind: input, shape index: {}]
  %s3 = inlined_call_operand.vmem [shape: f32[1,128], index: 3, kind: input, shape index: {}]
  %s4 = inlined_call_operand.hbm [shape: f32[2,16,128], index: 4, kind: output, shape index: {}]
  %s5 = sld [smem:[#allocation0]]
  $region61: #{attention_pallas.1} parent=0
    _
  %s7 = ssub.s32 1, %s5
  %s8 = scalar_select 0, %s7, %s5
  $region1: #{attention_pallas.1} parent=0
    #allocation2 [shape = 'u8[16384]{0}', space=vmem, size = 0x4000, scoped, tag = 'input window, operand 0']
    #allocation3 [shape = 's32[2]{0}', space=sflag, size = 0x8, scoped, tag = 'scoped memory for attention_pallas.1']
    #allocation4 [shape = 's32[2]{0}', space=sflag, size = 0x8, scoped, tag = 'scoped memory for attention_pallas.1']
    #allocation5 [shape = 'u8[98304]{0}', space=vmem, size = 0x18000, scoped, tag = 'input window, operand 1, single buffered']
    #allocation6 [shape = 's32[1]{0}', space=sflag, size = 0x4, scoped, tag = 'scoped memory for attention_pallas.1']
    #allocation7 [shape = 'u8[32768]{0}', space=vmem, size = 0x8000, scoped, tag = 'input window, operand 2, single buffered']
    #allocation8 [shape = 'u8[16384]{0}', space=vmem, size = 0x4000, scoped, tag = 'output window, operand 0']
    %9 = vsyncpa [#allocation3], 0
    %s10 = scalar_lea.sflag [#allocation3], 1
    %11 = vsyncpa %s10, 0
    %12 = vsyncpa [#allocation6], 0
    %13 = vsyncpa [#allocation4], 0
    %s14 = scalar_lea.sflag [#allocation4], 1
    %15 = vsyncpa %s14, 0
    loop: start=0, step=1, limit=4
    $region2: #{attention_pallas.1} parent=1 // loop_pre_header
      _
    $region3: #{attention_pallas.1} parent=1 // loop_header
      %s17 = sphi 0, %s21
      %p18 = scmp.ge.s32.totalorder %s17, 4
      %s27 = sphi 0, %s29
      %s30 = sphi 0, %s27
      %s31 = sphi 0, %s30
      %s47 = sphi 0, %s31
      %s51 = sphi 0, %s51
      %s53 = sphi 0, %s51
      %s54 = sphi 0, %s53
      %s68 = sphi 0, %s54
      %s72 = sphi 0, %s72
      %s74 = sphi 0, %s72
      %s75 = sphi 0, %s74
      %s89 = sphi 0, %s75
      %s93 = sphi 0, %s93
      %s95 = sphi 0, %s93
      %s96 = sphi 0, %s95
      %s110 = sphi 0, %s96
      %s116 = sphi 0, %s118
      %s119 = sphi 0, %s116
      %s120 = sphi 0, %s119
      %s136 = sphi 0, %s120
    $region4: #{attention_pallas.1} parent=1 // loop_header_branch
      %20 = sbr.rel (%p18) target = $region8
    $region5: #{attention_pallas.1} parent=1 // loop_body
      %s22 = ssub.s32 %s17, 1
      %s23 = ssub.s32 %s17, 2
      %s24 = sadd.s32 %s17, 1
      %s25 = ssub.s32 %s17, %s24
      %p26 = scmp.eq.s32.totalorder %s25, 0
      %s28 = sadd.s32 %s27, 1
      %s29 = scalar_select %p26, %s27, %s28
      %p32 = pneg %p26
      %p33 = scmp.eq.s32.totalorder %s17, 1
      %p34 = por %p32, %p33
      %p35 = scmp.ne.s32.totalorder %s27, %s30
      %p36 = scmp.eq.s32.totalorder %s17, 0
      %p37 = por %p35, %p36
      %p38 = scmp.ne.s32.totalorder %s27, %s30
      %p39 = scmp.eq.s32.totalorder %s22, 1
      %p40 = por %p38, %p39
      %p41 = scmp.ne.s32.totalorder %s30, %s31
      %p42 = scmp.eq.s32.totalorder %s22, 0
      %p43 = por %p41, %p42
      %p44 = scmp.ne.s32.totalorder %s30, %s31
      %p45 = scmp.eq.s32.totalorder %s23, 1
      %p46 = por %p44, %p45
      %p48 = scmp.ne.s32.totalorder %s31, %s47
      %p49 = scmp.eq.s32.totalorder %s23, 0
      %p50 = por %p48, %p49
      %s52 = sadd.s32 %s51, 1
      %p55 = scmp.eq.s32.totalorder %s17, 1
      %p56 = scmp.ne.s32.totalorder %s51, %s53
      %p57 = scmp.eq.s32.totalorder %s17, 0
      %p58 = por %p56, %p57
      %p59 = scmp.ne.s32.totalorder %s51, %s53
      %p60 = scmp.eq.s32.totalorder %s22, 1
      %p61 = por %p59, %p60
      %p62 = scmp.ne.s32.totalorder %s53, %s54
      %p63 = scmp.eq.s32.totalorder %s22, 0
      %p64 = por %p62, %p63
      %p65 = scmp.ne.s32.totalorder %s53, %s54
      %p66 = scmp.eq.s32.totalorder %s23, 1
      %p67 = por %p65, %p66
      %p69 = scmp.ne.s32.totalorder %s54, %s68
      %p70 = scmp.eq.s32.totalorder %s23, 0
      %p71 = por %p69, %p70
      %s73 = sadd.s32 %s72, 1
      %p76 = scmp.eq.s32.totalorder %s17, 1
      %p77 = scmp.ne.s32.totalorder %s72, %s74
      %p78 = scmp.eq.s32.totalorder %s17, 0
      %p79 = por %p77, %p78
      %p80 = scmp.ne.s32.totalorder %s72, %s74
      %p81 = scmp.eq.s32.totalorder %s22, 1
      %p82 = por %p80, %p81
      %p83 = scmp.ne.s32.totalorder %s74, %s75
      %p84 = scmp.eq.s32.totalorder %s22, 0
      %p85 = por %p83, %p84
      %p86 = scmp.ne.s32.totalorder %s74, %s75
      %p87 = scmp.eq.s32.totalorder %s23, 1
      %p88 = por %p86, %p87
      %p90 = scmp.ne.s32.totalorder %s75, %s89
      %p91 = scmp.eq.s32.totalorder %s23, 0
      %p92 = por %p90, %p91
      %s94 = sadd.s32 %s93, 1
      %p97 = scmp.eq.s32.totalorder %s17, 1
      %p98 = scmp.ne.s32.totalorder %s93, %s95
      %p99 = scmp.eq.s32.totalorder %s17, 0
      %p100 = por %p98, %p99
      %p101 = scmp.ne.s32.totalorder %s93, %s95
      %p102 = scmp.eq.s32.totalorder %s22, 1
      %p103 = por %p101, %p102
      %p104 = scmp.ne.s32.totalorder %s95, %s96
      %p105 = scmp.eq.s32.totalorder %s22, 0
      %p106 = por %p104, %p105
      %p107 = scmp.ne.s32.totalorder %s95, %s96
      %p108 = scmp.eq.s32.totalorder %s23, 1
      %p109 = por %p107, %p108
      %p111 = scmp.ne.s32.totalorder %s96, %s110
      %p112 = scmp.eq.s32.totalorder %s23, 0
      %p113 = por %p111, %p112
      %s114 = ssub.s32 %s17, %s24
      %p115 = scmp.eq.s32.totalorder %s114, 0
      %s117 = sadd.s32 %s116, 1
      %s118 = scalar_select %p115, %s116, %s117
      %p121 = pneg %p115
      %p122 = scmp.eq.s32.totalorder %s17, 1
      %p123 = por %p121, %p122
      %p124 = scmp.ne.s32.totalorder %s116, %s119
      %p125 = scmp.eq.s32.totalorder %s17, 0
      %p126 = por %p124, %p125
      %p127 = scmp.ne.s32.totalorder %s116, %s119
      %p128 = scmp.eq.s32.totalorder %s22, 1
      %p129 = por %p127, %p128
      %p130 = scmp.ne.s32.totalorder %s119, %s120
      %p131 = scmp.eq.s32.totalorder %s22, 0
      %p132 = por %p130, %p131
      %p133 = scmp.ne.s32.totalorder %s119, %s120
      %p134 = scmp.eq.s32.totalorder %s23, 1
      %p135 = por %p133, %p134
      %p137 = scmp.ne.s32.totalorder %s120, %s136
      %p138 = scmp.eq.s32.totalorder %s23, 0
      %p139 = por %p137, %p138
      %p140 = scmp.le.s32.totalorder 1, %s17
      %p141 = scmp.lt.s32.totalorder %s17, 3
      %p142 = pnand %p140, %p141
      %p143 = pneg %p142
      // Predicated region
      $region9: #{attention_pallas.1} parent=5 // pred_check
        _
      $region10: #{attention_pallas.1} parent=5 // pred_check_branch
        %145 = sbr.rel (%p142) target = $region12
      $region11: #{attention_pallas.1} parent=5 // pred_region
        %s146 = ssub.s32 %s17, 1
        // Predicated region
        $region13: #{attention_pallas.1} parent=11 // pred_check
          %p147 = pneg %p64
        $region14: #{attention_pallas.1} parent=11 // pred_check_branch
          %149 = sbr.rel (%p147) target = $region16
        $region15: #{attention_pallas.1} parent=11 // pred_region
          %s151 = ssub.s32 3072, 3072
          %152 = vsyncadd [#allocation6], %s151
          %s153 = sshll.u32 [#allocation5], 4
          %s154 = int_to_ptr.vmem [resolvable:$true] %s153
          %159 = dma.hbm_to_vmem [thread:$0]  %s1, 3072, %s154, [#allocation6], 192, 192, 12
        $region16: #{attention_pallas.1} parent=11 // pred_fallthru
          _
        // Predicated region
        $region17: #{attention_pallas.1} parent=11 // pred_check
          %p160 = pneg %p85
        $region18: #{attention_pallas.1} parent=11 // pred_check_branch
          %162 = sbr.rel (%p160) target = $region20
        $region19: #{attention_pallas.1} parent=11 // pred_region
          %s164 = ssub.s32 1024, 1024
          %165 = vsyncadd [#allocation6], %s164
          %s166 = sshll.u32 [#allocation7], 4
          %s167 = int_to_ptr.vmem [resolvable:$true] %s166
          %172 = dma.hbm_to_vmem [thread:$0]  %s2, 1024, %s167, [#allocation6], 64, 64, 4
        $region20: #{attention_pallas.1} parent=11 // pred_fallthru
          _
        // Predicated region
        $region21: #{attention_pallas.1} parent=11 // pred_check
          %p173 = pneg %p106
        $region22: #{attention_pallas.1} parent=11 // pred_check_branch
          %175 = sbr.rel (%p173) target = $region24
        $region23: #{attention_pallas.1} parent=11 // pred_region
          _
        $region24: #{attention_pallas.1} parent=11 // pred_fallthru
          _
      $region12: #{attention_pallas.1} parent=5 // pred_fallthru
        _
      %p176 = scmp.lt.s32.totalorder %s17, 2
      // Predicated region
      $region25: #{attention_pallas.1} parent=5 // pred_check
        %p177 = pneg %p176
      $region26: #{attention_pallas.1} parent=5 // pred_check_branch
        %179 = sbr.rel (%p177) target = $region28
      $region27: #{attention_pallas.1} parent=5 // pred_region
        // Predicated region
        $region29: #{attention_pallas.1} parent=27 // pred_check
          %p180 = pneg %p37
        $region30: #{attention_pallas.1} parent=27 // pred_check_branch
          %182 = sbr.rel (%p180) target = $region32
        $region31: #{attention_pallas.1} parent=27 // pred_region
          %s183 = sand.u32 %s27, 1
          %s184 = scalar_lea.sflag [#allocation3], %s183
          %s185 = sand.u32 %s27, 1
          %s186 = smul.addr %s185, 16
          %s187 = scalar_lea.vmem [#allocation2], %s186
          %s189 = ssub.s32 256, 256
          %190 = vsyncadd %s184, %s189
          %s191 = smul.addr %s17, 2
          %s192 = smul.addr %s191, 128
          %s193 = scalar_lea.hbm %s0, %s192
          %s194 = sshll.u32 %s187, 4
          %s195 = int_to_ptr.vmem [resolvable:$true] %s194
          %200 = dma.hbm_to_vmem [thread:$0]  %s193, 256, %s195, %s184, 128, 128, 8
        $region32: #{attention_pallas.1} parent=27 // pred_fallthru
          _
      $region28: #{attention_pallas.1} parent=5 // pred_fallthru
        _
      %p201 = scmp.le.s32.totalorder 1, %s17
      %p202 = scmp.lt.s32.totalorder %s17, 3
      %p203 = pnand %p201, %p202
      %p204 = pneg %p203
      // Predicated region
      $region33: #{attention_pallas.1} parent=5 // pred_check
        _
      $region34: #{attention_pallas.1} parent=5 // pred_check_branch
        %206 = sbr.rel (%p203) target = $region36
      $region35: #{attention_pallas.1} parent=5 // pred_region
        %s207 = ssub.s32 %s17, 1
        %s208 = sand.u32 %s30, 1
        %s209 = scalar_lea.sflag [#allocation3], %s208
        %s210 = sand.u32 %s30, 1
        %s211 = smul.addr %s210, 16
        %s212 = scalar_lea.vmem [#allocation2], %s211
        // Predicated region
        $region37: #{attention_pallas.1} parent=35 // pred_check
          %p213 = pneg %p43
        $region38: #{attention_pallas.1} parent=35 // pred_check_branch
          %215 = sbr.rel (%p213) target = $region40
        $region39: #{attention_pallas.1} parent=35 // pred_region
          %216 = dma.done %s209, 256
        $region40: #{attention_pallas.1} parent=35 // pred_fallthru
          _
        // Predicated region
        $region41: #{attention_pallas.1} parent=35 // pred_check
          %p217 = pneg %p64
        $region42: #{attention_pallas.1} parent=35 // pred_check_branch
          %219 = sbr.rel (%p217) target = $region44
        $region43: #{attention_pallas.1} parent=35 // pred_region
          %220 = dma.done [#allocation6], 3072
        $region44: #{attention_pallas.1} parent=35 // pred_fallthru
          _
        // Predicated region
        $region45: #{attention_pallas.1} parent=35 // pred_check
          %p221 = pneg %p85
        $region46: #{attention_pallas.1} parent=35 // pred_check_branch
          %223 = sbr.rel (%p221) target = $region48
        $region47: #{attention_pallas.1} parent=35 // pred_region
          %224 = dma.done [#allocation6], 1024
        $region48: #{attention_pallas.1} parent=35 // pred_fallthru
          _
        %s225 = sand.u32 %s30, 1
        %s226 = scalar_lea.sflag [#allocation3], %s225
        %s227 = sand.u32 %s30, 1
        %s228 = smul.addr %s227, 16
        %s229 = scalar_lea.vmem [#allocation2], %s228
        %p230 = pneg %p43
        %p231 = pneg %p40
        %p232 = pneg %p64
        %p233 = pneg %p61
        %p234 = pneg %p85
        %p235 = pneg %p82
        %p236 = pneg %p106
        %p237 = pneg %p103
        %p238 = pneg %p132
        %p239 = pneg %p129
        %s240 = sand.u32 %s119, 1
        %s241 = scalar_lea.sflag [#allocation4], %s240
        %s242 = sand.u32 %s119, 1
        %s243 = smul.addr %s242, 16
        %s244 = scalar_lea.vmem [#allocation8], %s243
        %v246 = vld [vmem:[%s212] sm:$0xff]
        %v247 = vld [vmem:[%s212 + $0x8] sm:$0xff]
        %v248 = vpack.c.bf16 %v247, %v246
        %v249 = vld [vmem:[#allocation5] sm:$0xff]
        %v250 = vld [vmem:[#allocation5 + $0x8] sm:$0xf]
        %v251 = vld [vmem:[#allocation5 + $0xc] sm:$0xff]
        %v252 = vld [vmem:[#allocation5 + $0x14] sm:$0xf]
        %v253 = vld [vmem:[#allocation5 + $0x18] sm:$0xff]
        %v254 = vld [vmem:[#allocation5 + $0x20] sm:$0xf]
        %v255 = vld [vmem:[#allocation5 + $0x24] sm:$0xff]
        %v256 = vld [vmem:[#allocation5 + $0x2c] sm:$0xf]
        %v257 = vld [vmem:[#allocation5 + $0x30] sm:$0xff]
        %v258 = vld [vmem:[#allocation5 + $0x38] sm:$0xf]
        %v259 = vld [vmem:[#allocation5 + $0x3c] sm:$0xff]
        %v260 = vld [vmem:[#allocation5 + $0x44] sm:$0xf]
        %v261 = vld [vmem:[#allocation5 + $0x48] sm:$0xff]
        %v262 = vld [vmem:[#allocation5 + $0x50] sm:$0xf]
        %v263 = vld [vmem:[#allocation5 + $0x54] sm:$0xff]
        %v264 = vld [vmem:[#allocation5 + $0x5c] sm:$0xf]
        %v265 = vld [vmem:[#allocation5 + $0x60] sm:$0xff]
        %v266 = vld [vmem:[#allocation5 + $0x68] sm:$0xf]
        %v267 = vld [vmem:[#allocation5 + $0x6c] sm:$0xff]
        %v268 = vld [vmem:[#allocation5 + $0x74] sm:$0xf]
        %v269 = vld [vmem:[#allocation5 + $0x78] sm:$0xff]
        %v270 = vld [vmem:[#allocation5 + $0x80] sm:$0xf]
        %v271 = vld [vmem:[#allocation5 + $0x84] sm:$0xff]
        %v272 = vld [vmem:[#allocation5 + $0x8c] sm:$0xf]
        %v273 = vld [vmem:[#allocation5 + $0x90] sm:$0xff]
        %v274 = vld [vmem:[#allocation5 + $0x98] sm:$0xf]
        %v275 = vld [vmem:[#allocation5 + $0x9c] sm:$0xff]
        %v276 = vld [vmem:[#allocation5 + $0xa4] sm:$0xf]
        %v277 = vld [vmem:[#allocation5 + $0xa8] sm:$0xff]
        %v278 = vld [vmem:[#allocation5 + $0xb0] sm:$0xf]
        %v279 = vld [vmem:[#allocation5 + $0xb4] sm:$0xff]
        %v280 = vld [vmem:[#allocation5 + $0xbc] sm:$0xf]
        %v313 = vunpack.c.l.b16 %v249
        %v314 = vunpack.c.h.b16 %v249
        %v315 = vunpack.c.l.b16 %v250
        %v316 = vunpack.c.l.b16 %v251
        %v317 = vunpack.c.h.b16 %v251
        %v318 = vunpack.c.l.b16 %v252
        %v319 = vunpack.c.l.b16 %v253
        %v320 = vunpack.c.h.b16 %v253
        %v321 = vunpack.c.l.b16 %v254
        %v322 = vunpack.c.l.b16 %v255
        %v323 = vunpack.c.h.b16 %v255
        %v324 = vunpack.c.l.b16 %v256
        %v325 = vunpack.c.l.b16 %v257
        %v326 = vunpack.c.h.b16 %v257
        %v327 = vunpack.c.l.b16 %v258
        %v328 = vunpack.c.l.b16 %v259
        %v329 = vunpack.c.h.b16 %v259
        %v330 = vunpack.c.l.b16 %v260
        %v331 = vunpack.c.l.b16 %v261
        %v332 = vunpack.c.h.b16 %v261
        %v333 = vunpack.c.l.b16 %v262
        %v334 = vunpack.c.l.b16 %v263
        %v335 = vunpack.c.h.b16 %v263
        %v336 = vunpack.c.l.b16 %v264
        %v337 = vunpack.c.l.b16 %v265
        %v338 = vunpack.c.h.b16 %v265
        %v339 = vunpack.c.l.b16 %v266
        %v340 = vunpack.c.l.b16 %v267
        %v341 = vunpack.c.h.b16 %v267
        %v342 = vunpack.c.l.b16 %v268
        %v343 = vunpack.c.l.b16 %v269
        %v344 = vunpack.c.h.b16 %v269
        %v345 = vunpack.c.l.b16 %v270
        %v346 = vunpack.c.l.b16 %v271
        %v347 = vunpack.c.h.b16 %v271
        %v348 = vunpack.c.l.b16 %v272
        %v349 = vunpack.c.l.b16 %v273
        %v350 = vunpack.c.h.b16 %v273
        %v351 = vunpack.c.l.b16 %v274
        %v352 = vunpack.c.l.b16 %v275
        %v353 = vunpack.c.h.b16 %v275
        %v354 = vunpack.c.l.b16 %v276
        %v355 = vunpack.c.l.b16 %v277
        %v356 = vunpack.c.h.b16 %v277
        %v357 = vunpack.c.l.b16 %v278
        %v358 = vunpack.c.l.b16 %v279
        %v359 = vunpack.c.h.b16 %v279
        %v360 = vunpack.c.l.b16 %v280
        %v361 = vpack.c.b16 %v316, %v313
        %v362 = vpack.c.b16 %v317, %v314
        %v363 = vpack.c.b16 %v318, %v315
        %v364 = vpack.c.b16 %v322, %v319
        %v365 = vpack.c.b16 %v323, %v320
        %v366 = vpack.c.b16 %v324, %v321
        %v367 = vpack.c.b16 %v328, %v325
        %v368 = vpack.c.b16 %v329, %v326
        %v369 = vpack.c.b16 %v330, %v327
        %v370 = vpack.c.b16 %v334, %v331
        %v371 = vpack.c.b16 %v335, %v332
        %v372 = vpack.c.b16 %v336, %v333
        %v373 = vpack.c.b16 %v340, %v337
        %v374 = vpack.c.b16 %v341, %v338
        %v375 = vpack.c.b16 %v342, %v339
        %v376 = vpack.c.b16 %v346, %v343
        %v377 = vpack.c.b16 %v347, %v344
        %v378 = vpack.c.b16 %v348, %v345
        %v379 = vpack.c.b16 %v352, %v349
        %v380 = vpack.c.b16 %v353, %v350
        %v381 = vpack.c.b16 %v354, %v351
        %v382 = vpack.c.b16 %v358, %v355
        %v383 = vpack.c.b16 %v359, %v356
        %v384 = vpack.c.b16 %v360, %v357
        %409 = vmatprep.subr.bf16.mxu0 %v383
        %410 = vmatpush1.bf16.msra.mxu0 %v382
        %411 = vmatprep.subr.bf16.mxu0 %v380
        %412 = vmatpush1.bf16.msra.mxu0 %v379
        %413 = vmatprep.subr.bf16.mxu0 %v377
        %414 = vmatpush1.bf16.msra.mxu0 %v376
        %415 = vmatprep.subr.bf16.mxu0 %v374
        %416 = vmatpush1.bf16.msra.mxu0 %v373
        %417 = vmatprep.subr.bf16.mxu0 %v371
        %418 = vmatpush1.bf16.msra.mxu0 %v370
        %419 = vmatprep.subr.bf16.mxu0 %v368
        %420 = vmatpush1.bf16.msra.mxu0 %v367
        %421 = vmatprep.subr.bf16.mxu0 %v365
        %422 = vmatpush1.bf16.msra.mxu0 %v364
        %423 = vmatprep.subr.bf16.mxu0 %v362
        %424 = vmatpush1.bf16.msra.mxu0 %v361
        %425 = vmatprep.subr.bf16.mxu0 0
        %426 = vmatpush2.bf16.msra.mxu0 0
        %427 = vmatprep.subr.bf16.mxu0 0
        %428 = vmatpush2.bf16.msra.mxu0 0
        %429 = vmatprep.subr.bf16.mxu0 0
        %430 = vmatpush2.bf16.msra.mxu0 0
        %431 = vmatprep.subr.bf16.mxu0 0
        %432 = vmatpush2.bf16.msra.mxu0 0
        %433 = vmatprep.subr.bf16.mxu0 0
        %434 = vmatpush2.bf16.msra.mxu0 0
        %435 = vmatprep.subr.bf16.mxu0 0
        %436 = vmatpush2.bf16.msra.mxu0 0
        %437 = vmatprep.subr.bf16.mxu0 0
        %438 = vmatpush2.bf16.msra.mxu0 0
        %439 = vmatprep.subr.bf16.mxu0 0
        %440 = vmatpush2.bf16.msra.mxu0 0
        %441 = vmatprep.mubr.bf16.mxu0 0
        %442 = vmatmul.mubr.bf16.gmra.mxu0 %v248
        %v443 = vpop.f32.mrf.mxu0
        %v444 = vadd.f32 0.0, %v443
        %v445 = vpop.f32.mrf.mxu0
        %v446 = vadd.f32 0.0, %v445
        %v447 = vpop.f32.mrf.mxu0
        %v448 = vadd.f32 0.0, %v447
        %v449 = vpop.f32.mrf.mxu0
        %v450 = vadd.f32 0.0, %v449
        %451 = vdwg.mxu0
        %452 = vmatprep.subr.bf16.mxu0 0
        %453 = vmatpush1.bf16.msra.mxu0 %v384
        %454 = vmatprep.subr.bf16.mxu0 0
        %455 = vmatpush1.bf16.msra.mxu0 %v381
        %456 = vmatprep.subr.bf16.mxu0 0
        %457 = vmatpush1.bf16.msra.mxu0 %v378
        %458 = vmatprep.subr.bf16.mxu0 0
        %459 = vmatpush1.bf16.msra.mxu0 %v375
        %460 = vmatprep.subr.bf16.mxu0 0
        %461 = vmatpush1.bf16.msra.mxu0 %v372
        %462 = vmatprep.subr.bf16.mxu0 0
        %463 = vmatpush1.bf16.msra.mxu0 %v369
        %464 = vmatprep.subr.bf16.mxu0 0
        %465 = vmatpush1.bf16.msra.mxu0 %v366
        %466 = vmatprep.subr.bf16.mxu0 0
        %467 = vmatpush1.bf16.msra.mxu0 %v363
        %468 = vmatprep.subr.bf16.mxu0 0
        %469 = vmatpush2.bf16.msra.mxu0 0
        %470 = vmatprep.subr.bf16.mxu0 0
        %471 = vmatpush2.bf16.msra.mxu0 0
        %472 = vmatprep.subr.bf16.mxu0 0
        %473 = vmatpush2.bf16.msra.mxu0 0
        %474 = vmatprep.subr.bf16.mxu0 0
        %475 = vmatpush2.bf16.msra.mxu0 0
        %476 = vmatprep.subr.bf16.mxu0 0
        %477 = vmatpush2.bf16.msra.mxu0 0
        %478 = vmatprep.subr.bf16.mxu0 0
        %479 = vmatpush2.bf16.msra.mxu0 0
        %480 = vmatprep.subr.bf16.mxu0 0
        %481 = vmatpush2.bf16.msra.mxu0 0
        %482 = vmatprep.subr.bf16.mxu0 0
        %483 = vmatpush2.bf16.msra.mxu0 0
        %484 = vmatprep.mubr.bf16.mxu0 0
        %485 = vmatmul.mubr.bf16.gmra.mxu0 %v248
        %v486 = vpop.f32.mrf.mxu0
        %v487 = vadd.f32 0.0, %v486
        %v488 = vpop.f32.mrf.mxu0
        %v489 = vpop.f32.mrf.mxu0
        %v490 = vadd.f32 0.0, %v489
        %v491 = vpop.f32.mrf.mxu0
        %492 = vdwg.mxu0
        %v493 = vpack.c.bf16 %v448, %v444
        %v494 = vpack.c.bf16 %v450, %v446
        %v495 = vpack.c.bf16 %v490, %v487
        %vm496 = vcmask 523264
        %v498 = vsel %vm496, %v493, 0
        %v501 = vsel %vm496, %v494, 0
        %503 = vmatprep.subr.bf16.mxu0 0
        %504 = vmatpush1.bf16.xpose.msra.mxu0 0
        %505 = vmatprep.subr.bf16.mxu0 0
        %506 = vmatpush1.bf16.xpose.msra.mxu0 0
        %507 = vmatprep.subr.bf16.mxu0 0
        %508 = vmatpush1.bf16.xpose.msra.mxu0 0
        %509 = vmatprep.subr.bf16.mxu0 0
        %510 = vmatpush1.bf16.xpose.msra.mxu0 0
        %511 = vmatprep.subr.bf16.mxu0 0
        %512 = vmatpush1.bf16.xpose.msra.mxu0 0
        %513 = vmatprep.subr.bf16.mxu0 0
        %514 = vmatpush1.bf16.xpose.msra.mxu0 0
        %515 = vmatprep.subr.bf16.mxu0 0
        %516 = vmatpush1.bf16.xpose.msra.mxu0 0
        %517 = vmatprep.subr.bf16.mxu0 0
        %518 = vmatpush1.bf16.xpose.msra.mxu0 %v501
        %519 = vmatprep.subr.bf16.mxu0 0
        %520 = vmatpush2.bf16.xpose.msra.mxu0 0
        %521 = vmatprep.subr.bf16.mxu0 0
        %522 = vmatpush2.bf16.xpose.msra.mxu0 0
        %523 = vmatprep.subr.bf16.mxu0 0
        %524 = vmatpush2.bf16.xpose.msra.mxu0 0
        %525 = vmatprep.subr.bf16.mxu0 0
        %526 = vmatpush2.bf16.xpose.msra.mxu0 0
        %527 = vmatprep.subr.bf16.mxu0 0
        %528 = vmatpush2.bf16.xpose.msra.mxu0 0
        %529 = vmatprep.subr.bf16.mxu0 0
        %530 = vmatpush2.bf16.xpose.msra.mxu0 0
        %531 = vmatprep.subr.bf16.mxu0 0
        %532 = vmatpush2.bf16.xpose.msra.mxu0 0
        %533 = vmatprep.subr.bf16.mxu0 0
        %534 = vmatpush2.bf16.xpose.msra.mxu0 0
        %535 = vmatprep.mubr.bf16.mxu0 0
        %536 = vmatmul.mubr.bf16.gmra.mxu0 %v498
        %v537 = vpop.f32.mrf.mxu0
        %v538 = vadd.f32 0.0, %v537
        %v539 = vpop.f32.mrf.mxu0
        %v540 = vpop.f32.mrf.mxu0
        %v541 = vadd.f32 0.0, %v540
        %v542 = vpop.f32.mrf.mxu0
        %543 = vdwg.mxu0
        %vm544 = vcmask 130048
        %v545 = vsel %vm544, %v538, -inf
        %546 = vmax.xlane.f32.xlu0 %v545
        %v547 = vpop.xlane.xlu0 %546
        %v548 = vsel %vm544, %v541, -inf
        %549 = vmax.xlane.f32.xlu0 %v548
        %v550 = vpop.xlane.xlu0 %549
        %v551 = vsub.f32 %v538, %v547
        %v552 = vsub.f32 %v541, %v550
        %v553 = vmul.f32 %v551, 1.442695
        %v554 = vpow.pop %v553
        %v555 = vmul.f32 %v552, 1.442695
        %v556 = vpow.pop %v555
        %v557 = vsel %vm544, %v554, 0.0
        %558 = vadd.xlane.f32.xlu0 %v557
        %v559 = vpop.xlane.xlu0 %558
        %v560 = vsel %vm544, %v556, 0.0
        %561 = vadd.xlane.f32.xlu0 %v560
        %v562 = vpop.xlane.xlu0 %561
        %v563 = vpack.c.bf16 %v556, %v554
        %v565 = vsel %vm544, %v563, 0
        %567 = vmatprep.subr.bf16.mxu0 0
        %568 = vmatpush1.bf16.msra.mxu0 0
        %569 = vmatprep.subr.bf16.mxu0 0
        %570 = vmatpush1.bf16.msra.mxu0 0
        %571 = vmatprep.subr.bf16.mxu0 0
        %572 = vmatpush1.bf16.msra.mxu0 0
        %573 = vmatprep.subr.bf16.mxu0 0
        %574 = vmatpush1.bf16.msra.mxu0 0
        %575 = vmatprep.subr.bf16.mxu0 0
        %576 = vmatpush1.bf16.msra.mxu0 0
        %577 = vmatprep.subr.bf16.mxu0 0
        %578 = vmatpush1.bf16.msra.mxu0 0
        %579 = vmatprep.subr.bf16.mxu0 0
        %580 = vmatpush1.bf16.msra.mxu0 0
        %581 = vmatprep.subr.bf16.mxu0 0
        %582 = vmatpush1.bf16.msra.mxu0 %v495
        %583 = vmatprep.subr.bf16.mxu0 0
        %584 = vmatpush2.bf16.msra.mxu0 0
        %585 = vmatprep.subr.bf16.mxu0 0
        %586 = vmatpush2.bf16.msra.mxu0 0
        %587 = vmatprep.subr.bf16.mxu0 0
        %588 = vmatpush2.bf16.msra.mxu0 0
        %589 = vmatprep.subr.bf16.mxu0 0
        %590 = vmatpush2.bf16.msra.mxu0 0
        %591 = vmatprep.subr.bf16.mxu0 0
        %592 = vmatpush2.bf16.msra.mxu0 0
        %593 = vmatprep.subr.bf16.mxu0 0
        %594 = vmatpush2.bf16.msra.mxu0 0
        %595 = vmatprep.subr.bf16.mxu0 0
        %596 = vmatpush2.bf16.msra.mxu0 0
        %597 = vmatprep.subr.bf16.mxu0 0
        %598 = vmatpush2.bf16.msra.mxu0 0
        %599 = vmatprep.mubr.bf16.mxu0 0
        %600 = vmatmul.mubr.bf16.gmra.mxu0 %v565
        %v601 = vpop.f32.mrf.mxu0
        %v602 = vadd.f32 0.0, %v601
        %v603 = vpop.f32.mrf.mxu0
        %v604 = vpop.f32.mrf.mxu0
        %v605 = vadd.f32 0.0, %v604
        %v606 = vpop.f32.mrf.mxu0
        %607 = vdwg.mxu0
        %v608 = vrcp.pop %v559
        %v609 = vrcp.pop %v562
        %v610 = vmul.f32 %v602, %v608
        %v611 = vmul.f32 %v605, %v609
        %613 = vrot.lane.b32.xlu0 %v493, 64
        %v614 = vpop.permute.xlu0 %613
        %616 = vrot.lane.b32.xlu0 %v494, 64
        %v617 = vpop.permute.xlu0 %616
        %v619 = vsel %vm496, %v614, 0
        %v622 = vsel %vm496, %v617, 0
        %624 = vmatprep.subr.bf16.mxu0 0
        %625 = vmatpush1.bf16.xpose.msra.mxu0 0
        %626 = vmatprep.subr.bf16.mxu0 0
        %627 = vmatpush1.bf16.xpose.msra.mxu0 0
        %628 = vmatprep.subr.bf16.mxu0 0
        %629 = vmatpush1.bf16.xpose.msra.mxu0 0
        %630 = vmatprep.subr.bf16.mxu0 0
        %631 = vmatpush1.bf16.xpose.msra.mxu0 0
        %632 = vmatprep.subr.bf16.mxu0 0
        %633 = vmatpush1.bf16.xpose.msra.mxu0 0
        %634 = vmatprep.subr.bf16.mxu0 0
        %635 = vmatpush1.bf16.xpose.msra.mxu0 0
        %636 = vmatprep.subr.bf16.mxu0 0
        %637 = vmatpush1.bf16.xpose.msra.mxu0 0
        %638 = vmatprep.subr.bf16.mxu0 0
        %639 = vmatpush1.bf16.xpose.msra.mxu0 %v622
        %640 = vmatprep.subr.bf16.mxu0 0
        %641 = vmatpush2.bf16.xpose.msra.mxu0 0
        %642 = vmatprep.subr.bf16.mxu0 0
        %643 = vmatpush2.bf16.xpose.msra.mxu0 0
        %644 = vmatprep.subr.bf16.mxu0 0
        %645 = vmatpush2.bf16.xpose.msra.mxu0 0
        %646 = vmatprep.subr.bf16.mxu0 0
        %647 = vmatpush2.bf16.xpose.msra.mxu0 0
        %648 = vmatprep.subr.bf16.mxu0 0
        %649 = vmatpush2.bf16.xpose.msra.mxu0 0
        %650 = vmatprep.subr.bf16.mxu0 0
        %651 = vmatpush2.bf16.xpose.msra.mxu0 0
        %652 = vmatprep.subr.bf16.mxu0 0
        %653 = vmatpush2.bf16.xpose.msra.mxu0 0
        %654 = vmatprep.subr.bf16.mxu0 0
        %655 = vmatpush2.bf16.xpose.msra.mxu0 0
        %656 = vmatprep.mubr.bf16.mxu0 0
        %657 = vmatmul.mubr.bf16.gmra.mxu0 %v619
        %v658 = vpop.f32.mrf.mxu0
        %v659 = vadd.f32 0.0, %v658
        %v660 = vpop.f32.mrf.mxu0
        %v661 = vpop.f32.mrf.mxu0
        %v662 = vadd.f32 0.0, %v661
        %v663 = vpop.f32.mrf.mxu0
        %664 = vdwg.mxu0
        %v665 = vsel %vm544, %v659, -inf
        %666 = vmax.xlane.f32.xlu0 %v665
        %v667 = vpop.xlane.xlu0 %666
        %v668 = vsel %vm544, %v662, -inf
        %669 = vmax.xlane.f32.xlu0 %v668
        %v670 = vpop.xlane.xlu0 %669
        %v671 = vsub.f32 %v659, %v667
        %v672 = vsub.f32 %v662, %v670
        %v673 = vmul.f32 %v671, 1.442695
        %v674 = vpow.pop %v673
        %v675 = vmul.f32 %v672, 1.442695
        %v676 = vpow.pop %v675
        %v677 = vsel %vm544, %v674, 0.0
        %678 = vadd.xlane.f32.xlu0 %v677
        %v679 = vpop.xlane.xlu0 %678
        %v680 = vsel %vm544, %v676, 0.0
        %681 = vadd.xlane.f32.xlu0 %v680
        %v682 = vpop.xlane.xlu0 %681
        %v683 = vpack.c.bf16 %v676, %v674
        %685 = vrot.lane.b32.xlu0 %v495, 64
        %v686 = vpop.permute.xlu0 %685
        %v689 = vsel %vm544, %v683, 0
        %691 = vmatprep.subr.bf16.mxu0 0
        %692 = vmatpush1.bf16.msra.mxu0 0
        %693 = vmatprep.subr.bf16.mxu0 0
        %694 = vmatpush1.bf16.msra.mxu0 0
        %695 = vmatprep.subr.bf16.mxu0 0
        %696 = vmatpush1.bf16.msra.mxu0 0
        %697 = vmatprep.subr.bf16.mxu0 0
        %698 = vmatpush1.bf16.msra.mxu0 0
        %699 = vmatprep.subr.bf16.mxu0 0
        %700 = vmatpush1.bf16.msra.mxu0 0
        %701 = vmatprep.subr.bf16.mxu0 0
        %702 = vmatpush1.bf16.msra.mxu0 0
        %703 = vmatprep.subr.bf16.mxu0 0
        %704 = vmatpush1.bf16.msra.mxu0 0
        %705 = vmatprep.subr.bf16.mxu0 0
        %706 = vmatpush1.bf16.msra.mxu0 %v686
        %707 = vmatprep.subr.bf16.mxu0 0
        %708 = vmatpush2.bf16.msra.mxu0 0
        %709 = vmatprep.subr.bf16.mxu0 0
        %710 = vmatpush2.bf16.msra.mxu0 0
        %711 = vmatprep.subr.bf16.mxu0 0
        %712 = vmatpush2.bf16.msra.mxu0 0
        %713 = vmatprep.subr.bf16.mxu0 0
        %714 = vmatpush2.bf16.msra.mxu0 0
        %715 = vmatprep.subr.bf16.mxu0 0
        %716 = vmatpush2.bf16.msra.mxu0 0
        %717 = vmatprep.subr.bf16.mxu0 0
        %718 = vmatpush2.bf16.msra.mxu0 0
        %719 = vmatprep.subr.bf16.mxu0 0
        %720 = vmatpush2.bf16.msra.mxu0 0
        %721 = vmatprep.subr.bf16.mxu0 0
        %722 = vmatpush2.bf16.msra.mxu0 0
        %723 = vmatprep.mubr.bf16.mxu0 0
        %724 = vmatmul.mubr.bf16.gmra.mxu0 %v689
        %v725 = vpop.f32.mrf.mxu0
        %v726 = vadd.f32 0.0, %v725
        %v727 = vpop.f32.mrf.mxu0
        %v728 = vpop.f32.mrf.mxu0
        %v729 = vadd.f32 0.0, %v728
        %v730 = vpop.f32.mrf.mxu0
        %731 = vdwg.mxu0
        %v732 = vrcp.pop %v679
        %v733 = vrcp.pop %v682
        %v734 = vmul.f32 %v726, %v732
        %v735 = vmul.f32 %v729, %v733
        %738 = vrot.lane.b32.xlu0 %v734, 64
        %v739 = vpop.permute.xlu0 %738
        %740 = vrot.lane.b32.xlu0 %v735, 64
        %v741 = vpop.permute.xlu0 %740
        %v744 = vsel %vm496, %v610, %v739
        %v745 = vsel %vm496, %v611, %v741
        %v746 = vpack.c.bf16 %v745, %v744
        %v747 = vld [vmem:[#allocation7] sm:$0xf]
        %v748 = vld [vmem:[#allocation7 + $0x4] sm:$0xf]
        %v749 = vld [vmem:[#allocation7 + $0x8] sm:$0xf]
        %v750 = vld [vmem:[#allocation7 + $0xc] sm:$0xf]
        %v751 = vld [vmem:[#allocation7 + $0x10] sm:$0xf]
        %v752 = vld [vmem:[#allocation7 + $0x14] sm:$0xf]
        %v753 = vld [vmem:[#allocation7 + $0x18] sm:$0xf]
        %v754 = vld [vmem:[#allocation7 + $0x1c] sm:$0xf]
        %v755 = vld [vmem:[#allocation7 + $0x20] sm:$0xf]
        %v756 = vld [vmem:[#allocation7 + $0x24] sm:$0xf]
        %v757 = vld [vmem:[#allocation7 + $0x28] sm:$0xf]
        %v758 = vld [vmem:[#allocation7 + $0x2c] sm:$0xf]
        %v759 = vld [vmem:[#allocation7 + $0x30] sm:$0xf]
        %v760 = vld [vmem:[#allocation7 + $0x34] sm:$0xf]
        %v761 = vld [vmem:[#allocation7 + $0x38] sm:$0xf]
        %v762 = vld [vmem:[#allocation7 + $0x3c] sm:$0xf]
        %v763 = vld [vmem:[%s3] sm:$0x1]
        %v765 = vlaneseq
        %v766 = vshrl.u32 %v765, 7
        %v767 = vsub.s32 0, %v766
        %v768 = vrot.slane %v763, %v767
        %v786 = vunpack.c.l.b16 %v747
        %v787 = vunpack.c.l.b16 %v748
        %v788 = vunpack.c.l.b16 %v749
        %v789 = vunpack.c.l.b16 %v750
        %v790 = vunpack.c.l.b16 %v751
        %v791 = vunpack.c.l.b16 %v752
        %v792 = vunpack.c.l.b16 %v753
        %v793 = vunpack.c.l.b16 %v754
        %v794 = vunpack.c.l.b16 %v755
        %v795 = vunpack.c.l.b16 %v756
        %v796 = vunpack.c.l.b16 %v757
        %v797 = vunpack.c.l.b16 %v758
        %v798 = vunpack.c.l.b16 %v759
        %v799 = vunpack.c.l.b16 %v760
        %v800 = vunpack.c.l.b16 %v761
        %v801 = vunpack.c.l.b16 %v762
        %v802 = vpack.c.b16 %v787, %v786
        %v803 = vpack.c.b16 %v789, %v788
        %v804 = vpack.c.b16 %v791, %v790
        %v805 = vpack.c.b16 %v793, %v792
        %v806 = vpack.c.b16 %v795, %v794
        %v807 = vpack.c.b16 %v797, %v796
        %v808 = vpack.c.b16 %v799, %v798
        %v809 = vpack.c.b16 %v801, %v800
        %818 = vmatprep.subr.bf16.mxu0 0
        %819 = vmatpush1.bf16.msra.mxu0 %v809
        %820 = vmatprep.subr.bf16.mxu0 0
        %821 = vmatpush1.bf16.msra.mxu0 %v808
        %822 = vmatprep.subr.bf16.mxu0 0
        %823 = vmatpush1.bf16.msra.mxu0 %v807
        %824 = vmatprep.subr.bf16.mxu0 0
        %825 = vmatpush1.bf16.msra.mxu0 %v806
        %826 = vmatprep.subr.bf16.mxu0 0
        %827 = vmatpush1.bf16.msra.mxu0 %v805
        %828 = vmatprep.subr.bf16.mxu0 0
        %829 = vmatpush1.bf16.msra.mxu0 %v804
        %830 = vmatprep.subr.bf16.mxu0 0
        %831 = vmatpush1.bf16.msra.mxu0 %v803
        %832 = vmatprep.subr.bf16.mxu0 0
        %833 = vmatpush1.bf16.msra.mxu0 %v802
        %834 = vmatprep.subr.bf16.mxu0 0
        %835 = vmatpush2.bf16.msra.mxu0 0
        %836 = vmatprep.subr.bf16.mxu0 0
        %837 = vmatpush2.bf16.msra.mxu0 0
        %838 = vmatprep.subr.bf16.mxu0 0
        %839 = vmatpush2.bf16.msra.mxu0 0
        %840 = vmatprep.subr.bf16.mxu0 0
        %841 = vmatpush2.bf16.msra.mxu0 0
        %842 = vmatprep.subr.bf16.mxu0 0
        %843 = vmatpush2.bf16.msra.mxu0 0
        %844 = vmatprep.subr.bf16.mxu0 0
        %845 = vmatpush2.bf16.msra.mxu0 0
        %846 = vmatprep.subr.bf16.mxu0 0
        %847 = vmatpush2.bf16.msra.mxu0 0
        %848 = vmatprep.subr.bf16.mxu0 0
        %849 = vmatpush2.bf16.msra.mxu0 0
        %850 = vmatprep.mubr.bf16.mxu0 0
        %851 = vmatmul.mubr.bf16.gmra.mxu0 %v746
        %v852 = vpop.f32.mrf.mxu0
        %v853 = vadd.f32 %v768, %v852
        %v854 = vpop.f32.mrf.mxu0
        %v855 = vpop.f32.mrf.mxu0
        %v856 = vadd.f32 %v768, %v855
        %v857 = vpop.f32.mrf.mxu0
        %858 = vdwg.mxu0
        %859 = vst [vmem:[%s244] sm:$0xff] %v853
        %860 = vst [vmem:[%s244 + $0x8] sm:$0xff] %v856
        %s861 = sand.u32 %s119, 1
        %s862 = scalar_lea.sflag [#allocation4], %s861
        %s863 = sand.u32 %s119, 1
        %s864 = smul.addr %s863, 16
        %s865 = scalar_lea.vmem [#allocation8], %s864
        // Predicated region
        $region49: #{attention_pallas.1} parent=35 // pred_check
          %p866 = pneg %p129
        $region50: #{attention_pallas.1} parent=35 // pred_check_branch
          %868 = sbr.rel (%p866) target = $region52
        $region51: #{attention_pallas.1} parent=35 // pred_region
          %s870 = ssub.s32 256, 256
          %871 = vsyncadd %s862, %s870
          %s872 = smul.addr %s22, 2
          %s873 = smul.addr %s872, 128
          %s874 = scalar_lea.hbm %s4, %s873
          %s875 = sshll.u32 %s865, 4
          %s876 = int_to_ptr.vmem [resolvable:$true] %s875
          %881 = dma.vmem_to_hbm [thread:$0]  %s876, 256, %s874, %s862, 128, 128, 8
        $region52: #{attention_pallas.1} parent=35 // pred_fallthru
          _
      $region36: #{attention_pallas.1} parent=5 // pred_fallthru
        _
      %p882 = scmp.le.s32.totalorder 2, %s17
      // Predicated region
      $region53: #{attention_pallas.1} parent=5 // pred_check
        %p883 = pneg %p882
      $region54: #{attention_pallas.1} parent=5 // pred_check_branch
        %885 = sbr.rel (%p883) target = $region56
      $region55: #{attention_pallas.1} parent=5 // pred_region
        %s886 = ssub.s32 %s17, 2
        // Predicated region
        $region57: #{attention_pallas.1} parent=55 // pred_check
          %p887 = pneg %p135
        $region58: #{attention_pallas.1} parent=55 // pred_check_branch
          %889 = sbr.rel (%p887) target = $region60
        $region59: #{attention_pallas.1} parent=55 // pred_region
          %s890 = sand.u32 %s120, 1
          %s891 = scalar_lea.sflag [#allocation4], %s890
          %s892 = sand.u32 %s120, 1
          %s893 = smul.addr %s892, 16
          %s894 = scalar_lea.vmem [#allocation8], %s893
          %895 = dma.done %s891, 256
        $region60: #{attention_pallas.1} parent=55 // pred_fallthru
          _
      $region56: #{attention_pallas.1} parent=5 // pred_fallthru
        _
    $region6: #{attention_pallas.1} parent=1 // loop_footer
      %s21 = sadd.s32 1, %s17
    $region7: #{attention_pallas.1} parent=1 // loop_footer_branch
      %16 = sbr.rel target = $region3
    $region8: #{attention_pallas.1} parent=1 // loop_exit
      _
    %896 = vsyncpa [#allocation3], 1
    %s897 = scalar_lea.sflag [#allocation3], 1
    %898 = vsyncpa %s897, 1
    %899 = vsyncpa [#allocation6], 1
    %900 = vsyncpa [#allocation4], 1
    %s901 = scalar_lea.sflag [#allocation4], 1
    %902 = vsyncpa %s901, 1

</llo_original>
